<compile_context>
chip_gen: v7x
topology: tpu7x:2x2x1
jax: 0.10.0
libtpu: 0.0.40
codegen_flags: <defaults>
</compile_context>

<pallas_src>
import functools

import jax
import jax.numpy as jnp
from jax.experimental import pallas as pl
from jax.experimental.pallas import tpu as pltpu


def _custom_loss_kernel(x_ref, t_ref, out_ref, *, rows_total, needs_row_mask):
    """x_ref: (1, r_blk, 128) f32 logits block; t_ref: (1, r_blk, 128) bf16 truth.

    out_ref: (3, 1, 8, 128) f32 lane-wise partial sums for this batch row:
      [0] -> sum(2 * erc * t), [1] -> sum(erc^2 + t), [2] -> sum(bce elements).
    The output block is the same for every step of the chunk (reduction) axis,
    so it acts as the accumulator; it is zeroed at chunk 0.
    """
    c = pl.program_id(1)

    @pl.when(c == 0)
    def _init():
        out_ref[...] = jnp.zeros_like(out_ref)

    x = x_ref[0]                                      # (r_blk, 128) f32
    t = t_ref[0].astype(jnp.float32)                  # (r_blk, 128) truth in {0,1}
    r_blk = x.shape[0]

    # ---- shared transcendentals (CSE across BCE and ABE-Dice paths) --------
    e = jnp.exp(-jnp.abs(x))                          # EUP exp, e in (0, 1]
    softplus = jnp.log(1.0 + e)                       # EUP log (== log1p(e) here)
    # Numerically stable BCE-with-logits: max(x,0) - x*t + log(1 + exp(-|x|))
    bce_e = jnp.maximum(x, 0.0) - x * t + softplus
    # sigmoid(x) reusing e; pl.reciprocal keeps the divide off the VALU.
    # (approx=True is faster on the EUP; validate against tolerance first.)
    inv = pl.reciprocal(1.0 + e, approx=False)
    pred = jnp.where(x >= 0.0, inv, e * inv)          # sigmoid(x)
    log_pred = jnp.minimum(x, 0.0) - softplus         # log(sigmoid(x)), exact & stable
    p3 = pred * pred * pred                           # cube via multiplies (off EUP)
    erc = jnp.exp((2.0 * (1.0 - p3)) * log_pred)      # pred ** (2*(1 - pred^3))

    num_e = 2.0 * erc * t
    den_e = erc * erc + t                             # square via multiply (off EUP)

    if needs_row_mask:
        # Only traced in when rows_total % r_blk != 0 (ragged last chunk).
        row = jax.lax.broadcasted_iota(jnp.int32, (r_blk, 128), 0) + c * r_blk
        valid = row < rows_total
        num_e = jnp.where(valid, num_e, 0.0)
        den_e = jnp.where(valid, den_e, 0.0)
        bce_e = jnp.where(valid, bce_e, 0.0)

    def fold(v):
        # (r_blk, 128) -> (8, 128) lane-wise partials: pure VPU vreg adds,
        # no cross-lane (XLU) reduction inside the hot loop.
        return jnp.sum(v.reshape(r_blk // 8, 8, 128), axis=0)

    out_ref[0, 0] += fold(num_e)
    out_ref[1, 0] += fold(den_e)
    out_ref[2, 0] += fold(bce_e)


def custom_loss(logits, truth, alpha=0.5, block_rows=4096):
    """logits, truth: same shape (B, ...). Returns scalar f32 loss.

    block_rows: rows of 128 lanes per block (default 4096 -> 2 MiB f32 logits
    block).  Raise on v5e/v6e (128 MiB VMEM) for slightly fewer grid steps.
    """
    B = logits.shape[0]
    x = logits.reshape(B, -1).astype(jnp.float32)
    # Truth values are {0, 1}: bf16 is exact and halves that HBM stream.
    t = truth.reshape(B, -1).astype(jnp.bfloat16)
    n_valid = x.shape[1]

    # Pad the flattened axis to a multiple of 16*128 so the (B, rows, 128) view
    # is lane-dense and sublane-aligned for both f32 (8) and bf16 (16) tiles.
    # Padding values (x = -200, t = 0) contribute exactly zero to every partial
    # sum (bce term, dice numerator and denominator), so no mask is needed.
    align = 16 * 128
    n_pad = (-n_valid) % align
    if n_pad:
        x = jnp.pad(x, ((0, 0), (0, n_pad)), constant_values=-200.0)
        t = jnp.pad(t, ((0, 0), (0, n_pad)), constant_values=0.0)
    rows = (n_valid + n_pad) // 128
    x3 = x.reshape(B, rows, 128)
    t3 = t.reshape(B, rows, 128)

    # Row-block size: biggest sublane-dense tile that keeps double-buffered
    # input blocks + in-kernel temporaries comfortably inside VMEM on v7x too.
    if rows <= block_rows:
        r_blk = rows                                   # full extent, no mask
    else:
        r_blk = max(16, (block_rows // 16) * 16)       # bf16 sublane packing
    num_chunks = pl.cdiv(rows, r_blk)
    needs_row_mask = (rows % r_blk) != 0

    kernel = functools.partial(_custom_loss_kernel,
                               rows_total=rows,
                               needs_row_mask=needs_row_mask)

    parts = pl.pallas_call(
        kernel,
        out_shape=jax.ShapeDtypeStruct((3, B, 8, 128), jnp.float32),
        grid_spec=pltpu.PrefetchScalarGridSpec(
            num_scalar_prefetch=0,
            grid=(B, num_chunks),
            in_specs=[
                pl.BlockSpec((1, r_blk, 128), lambda b, c: (b, c, 0)),
                pl.BlockSpec((1, r_blk, 128), lambda b, c: (b, c, 0)),
            ],
            # Lane-dense VMEM output block; same block across the reduction
            # axis -> acts as the per-batch-row accumulator.
            out_specs=pl.BlockSpec((3, 1, 8, 128), lambda b, c: (0, b, 0, 0)),
        ),
        compiler_params=pltpu.CompilerParams(
            # Batch rows are independent ("parallel": second TC on v7x);
            # the chunk axis is the streaming reduction ("arbitrary").
            dimension_semantics=("parallel", "arbitrary"),
            # Safe on v7x (64 MiB physical); v5e/v6e can raise this and
            # block_rows together for marginally fewer grid steps.
            vmem_limit_bytes=48 * 1024 * 1024,
        ),
    )(x3, t3)

    # Trivial final combine in the wrapper (tiny XLA reduction over 3*B*1024).
    num_b = jnp.sum(parts[0], axis=(1, 2))            # (B,)
    den_b = jnp.sum(parts[1], axis=(1, 2))            # (B,)
    bce_sum = jnp.sum(parts[2])
    abe_dice = 1.0 - jnp.mean(num_b / (den_b + 1e-6))
    bce_mean = bce_sum / jnp.float32(B * n_valid)
    return alpha * abe_dice + (1.0 - alpha) * bce_mean


def _reference(logits, truth, alpha):
    # Pure-JAX reference mirroring the PyTorch CustomLoss.forward.
    B = logits.shape[0]
    x = logits.reshape(B, -1).astype(jnp.float32)
    t = truth.reshape(B, -1).astype(jnp.float32)
    pred = jax.nn.sigmoid(x)
    bce = jnp.mean(jnp.maximum(x, 0.0) - x * t + jnp.log1p(jnp.exp(-jnp.abs(x))))
    erc = jnp.power(pred, 2.0 * (1.0 - pred ** 3))
    num = jnp.sum(2.0 * erc * t, axis=1)
    den = jnp.sum(erc * erc + t, axis=1)
    abe_dice = 1.0 - jnp.mean(num / (den + 1e-6))
    return alpha * abe_dice + (1.0 - alpha) * bce


if __name__ == "__main__":
    key = jax.random.PRNGKey(0)
    k1, k2 = jax.random.split(key)
    B, C, H, W = 2, 4, 16, 16
    logits = jax.random.normal(k1, (B, C, H, W), dtype=jnp.float32)
    truth = jax.random.bernoulli(k2, 0.5, (B, C, H, W)).astype(jnp.float32)
    alpha = 0.7

    out = jax.block_until_ready(custom_loss(logits, truth, alpha=alpha))
    ref = jax.block_until_ready(_reference(logits, truth, alpha))
    assert jnp.allclose(out, ref, atol=1e-4, rtol=1e-4), (out, ref)
    print("KERNEL_OK")
</pallas_src>

<mosaic_0001>
module attributes {stable_mosaic.version = 11 : i64} {
  func.func @_custom_loss_kernel(%arg0: i32, %arg1: i32, %arg2: memref<1x16x128xf32, #tpu.memory_space<vmem>>, %arg3: memref<1x16x128xbf16, #tpu.memory_space<vmem>>, %arg4: memref<3x1x8x128xf32, #tpu.memory_space<vmem>>) attributes {dimension_semantics = [#tpu.dimension_semantics<parallel>, #tpu.dimension_semantics<arbitrary>], iteration_bounds = array<i64: 2, 1>, scalar_prefetch = 0 : i64, scratch_operands = 0 : i64, tpu.core_type = #tpu.core_type<tc>, window_params = [{transform_indices = @transform_0, window_bounds = array<i64: 1, 16, 128>}, {transform_indices = @transform_1, window_bounds = array<i64: 1, 16, 128>}, {transform_indices = @transform_2, window_bounds = array<i64: 3, 1, 8, 128>}]} {
    %c0_i32 = arith.constant 0 : i32
    %0 = arith.cmpi eq, %arg1, %c0_i32 : i32
    %1 = arith.extui %0 : i1 to i32
    %c0_i32_0 = arith.constant 0 : i32
    %2 = arith.cmpi ne, %1, %c0_i32_0 : i32
    scf.if %2 {
      %cst_39 = arith.constant 0.000000e+00 : f32
      %67 = vector.broadcast %cst_39 : f32 to vector<3x1x8x128xf32>
      %c0_40 = arith.constant 0 : index
      %c0_41 = arith.constant 0 : index
      %c0_42 = arith.constant 0 : index
      %c0_43 = arith.constant 0 : index
      %68 = vector.load %arg4[%c0_40, %c0_41, %c0_42, %c0_43] : memref<3x1x8x128xf32, #tpu.memory_space<vmem>>, vector<3x1x8x128xf32>
      tpu.vector_store %arg4[%c0_40, %c0_41, %c0_42, %c0_43], %67 {strides = array<i32>} : memref<3x1x8x128xf32, #tpu.memory_space<vmem>>, vector<3x1x8x128xf32>,
    } else {
    }
    %c0 = arith.constant 0 : index
    %c0_1 = arith.constant 0 : index
    %c0_2 = arith.constant 0 : index
    %3 = vector.load %arg2[%c0, %c0_1, %c0_2] : memref<1x16x128xf32, #tpu.memory_space<vmem>>, vector<1x16x128xf32>
    %4 = vector.shape_cast %3 : vector<1x16x128xf32> to vector<16x128xf32>
    %c0_3 = arith.constant 0 : index
    %c0_4 = arith.constant 0 : index
    %c0_5 = arith.constant 0 : index
    %5 = vector.load %arg3[%c0_3, %c0_4, %c0_5] : memref<1x16x128xbf16, #tpu.memory_space<vmem>>, vector<1x16x128xbf16>
    %6 = vector.shape_cast %5 : vector<1x16x128xbf16> to vector<16x128xbf16>
    %7 = arith.extf %6 : vector<16x128xbf16> to vector<16x128xf32>
    %8 = math.absf %4 : vector<16x128xf32>
    %cst = arith.constant 0.000000e+00 : f32
    %9 = vector.broadcast %cst : f32 to vector<16x128xf32>
    %10 = arith.subf %9, %8 : vector<16x128xf32>
    %11 = math.exp %10 : vector<16x128xf32>
    %cst_6 = arith.constant 1.000000e+00 : f32
    %12 = vector.broadcast %cst_6 : f32 to vector<16x128xf32>
    %13 = arith.addf %12, %11 : vector<16x128xf32>
    %14 = math.log %13 : vector<16x128xf32>
    %cst_7 = arith.constant 0.000000e+00 : f32
    %15 = vector.broadcast %cst_7 : f32 to vector<16x128xf32>
    %16 = arith.maximumf %4, %15 : vector<16x128xf32>
    %17 = arith.mulf %4, %7 : vector<16x128xf32>
    %18 = arith.subf %16, %17 : vector<16x128xf32>
    %19 = arith.addf %18, %14 : vector<16x128xf32>
    %cst_8 = arith.constant 1.000000e+00 : f32
    %20 = vector.broadcast %cst_8 : f32 to vector<16x128xf32>
    %21 = arith.addf %20, %11 : vector<16x128xf32>
    %22 = tpu.reciprocal %21 : vector<16x128xf32> -> vector<16x128xf32>
    %cst_9 = arith.constant 0.000000e+00 : f32
    %23 = vector.broadcast %cst_9 : f32 to vector<16x128xf32>
    %24 = arith.cmpf oge, %4, %23 : vector<16x128xf32>
    %25 = arith.mulf %11, %22 : vector<16x128xf32>
    %26 = arith.select %24, %22, %25 : vector<16x128xi1>, vector<16x128xf32>
    %cst_10 = arith.constant 0.000000e+00 : f32
    %27 = vector.broadcast %cst_10 : f32 to vector<16x128xf32>
    %28 = arith.minimumf %4, %27 : vector<16x128xf32>
    %29 = arith.subf %28, %14 : vector<16x128xf32>
    %30 = arith.mulf %26, %26 : vector<16x128xf32>
    %31 = arith.mulf %30, %26 : vector<16x128xf32>
    %cst_11 = arith.constant 1.000000e+00 : f32
    %32 = vector.broadcast %cst_11 : f32 to vector<16x128xf32>
    %33 = arith.subf %32, %31 : vector<16x128xf32>
    %cst_12 = arith.constant 2.000000e+00 : f32
    %34 = vector.broadcast %cst_12 : f32 to vector<16x128xf32>
    %35 = arith.mulf %34, %33 : vector<16x128xf32>
    %36 = arith.mulf %35, %29 : vector<16x128xf32>
    %37 = math.exp %36 : vector<16x128xf32>
    %cst_13 = arith.constant 2.000000e+00 : f32
    %38 = vector.broadcast %cst_13 : f32 to vector<16x128xf32>
    %39 = arith.mulf %38, %37 : vector<16x128xf32>
    %40 = arith.mulf %39, %7 : vector<16x128xf32>
    %41 = arith.mulf %37, %37 : vector<16x128xf32>
    %42 = arith.addf %41, %7 : vector<16x128xf32>
    %c0_14 = arith.constant 0 : index
    %c0_15 = arith.constant 0 : index
    %c0_16 = arith.constant 0 : index
    %c0_17 = arith.constant 0 : index
    %43 = vector.load %arg4[%c0_14, %c0_15, %c0_16, %c0_17] : memref<3x1x8x128xf32, #tpu.memory_space<vmem>>, vector<1x1x8x128xf32>
    %44 = vector.shape_cast %43 : vector<1x1x8x128xf32> to vector<8x128xf32>
    %45 = vector.shape_cast %40 : vector<16x128xf32> to vector<2x8x128xf32>
    %cst_18 = arith.constant dense<0.000000e+00> : vector<8x128xf32>
    %46 = vector.multi_reduction <add>, %45, %cst_18 [0] : vector<2x8x128xf32> to vector<8x128xf32>
    %47 = arith.addf %44, %46 : vector<8x128xf32>
    %c0_19 = arith.constant 0 : index
    %c0_20 = arith.constant 0 : index
    %c0_21 = arith.constant 0 : index
    %c0_22 = arith.constant 0 : index
    %48 = vector.load %arg4[%c0_19, %c0_20, %c0_21, %c0_22] : memref<3x1x8x128xf32, #tpu.memory_space<vmem>>, vector<1x1x8x128xf32>
    %49 = vector.shape_cast %48 : vector<1x1x8x128xf32> to vector<8x128xf32>
    %50 = vector.shape_cast %47 : vector<8x128xf32> to vector<1x1x8x128xf32>
    tpu.vector_store %arg4[%c0_19, %c0_20, %c0_21, %c0_22], %50 {strides = array<i32>} : memref<3x1x8x128xf32, #tpu.memory_space<vmem>>, vector<1x1x8x128xf32>,
    %c1 = arith.constant 1 : index
    %c0_23 = arith.constant 0 : index
    %c0_24 = arith.constant 0 : index
    %c0_25 = arith.constant 0 : index
    %51 = vector.load %arg4[%c1, %c0_23, %c0_24, %c0_25] : memref<3x1x8x128xf32, #tpu.memory_space<vmem>>, vector<1x1x8x128xf32>
    %52 = vector.shape_cast %51 : vector<1x1x8x128xf32> to vector<8x128xf32>
    %53 = vector.shape_cast %42 : vector<16x128xf32> to vector<2x8x128xf32>
    %cst_26 = arith.constant dense<0.000000e+00> : vector<8x128xf32>
    %54 = vector.multi_reduction <add>, %53, %cst_26 [0] : vector<2x8x128xf32> to vector<8x128xf32>
    %55 = arith.addf %52, %54 : vector<8x128xf32>
    %c1_27 = arith.constant 1 : index
    %c0_28 = arith.constant 0 : index
    %c0_29 = arith.constant 0 : index
    %c0_30 = arith.constant 0 : index
    %56 = vector.load %arg4[%c1_27, %c0_28, %c0_29, %c0_30] : memref<3x1x8x128xf32, #tpu.memory_space<vmem>>, vector<1x1x8x128xf32>
    %57 = vector.shape_cast %56 : vector<1x1x8x128xf32> to vector<8x128xf32>
    %58 = vector.shape_cast %55 : vector<8x128xf32> to vector<1x1x8x128xf32>
    tpu.vector_store %arg4[%c1_27, %c0_28, %c0_29, %c0_30], %58 {strides = array<i32>} : memref<3x1x8x128xf32, #tpu.memory_space<vmem>>, vector<1x1x8x128xf32>,
    %c2 = arith.constant 2 : index
    %c0_31 = arith.constant 0 : index
    %c0_32 = arith.constant 0 : index
    %c0_33 = arith.constant 0 : index
    %59 = vector.load %arg4[%c2, %c0_31, %c0_32, %c0_33] : memref<3x1x8x128xf32, #tpu.memory_space<vmem>>, vector<1x1x8x128xf32>
    %60 = vector.shape_cast %59 : vector<1x1x8x128xf32> to vector<8x128xf32>
    %61 = vector.shape_cast %19 : vector<16x128xf32> to vector<2x8x128xf32>
    %cst_34 = arith.constant dense<0.000000e+00> : vector<8x128xf32>
    %62 = vector.multi_reduction <add>, %61, %cst_34 [0] : vector<2x8x128xf32> to vector<8x128xf32>
    %63 = arith.addf %60, %62 : vector<8x128xf32>
    %c2_35 = arith.constant 2 : index
    %c0_36 = arith.constant 0 : index
    %c0_37 = arith.constant 0 : index
    %c0_38 = arith.constant 0 : index
    %64 = vector.load %arg4[%c2_35, %c0_36, %c0_37, %c0_38] : memref<3x1x8x128xf32, #tpu.memory_space<vmem>>, vector<1x1x8x128xf32>
    %65 = vector.shape_cast %64 : vector<1x1x8x128xf32> to vector<8x128xf32>
    %66 = vector.shape_cast %63 : vector<8x128xf32> to vector<1x1x8x128xf32>
    tpu.vector_store %arg4[%c2_35, %c0_36, %c0_37, %c0_38], %66 {strides = array<i32>} : memref<3x1x8x128xf32, #tpu.memory_space<vmem>>, vector<1x1x8x128xf32>,
    return
  }
  func.func @transform_0(%arg0: i32, %arg1: i32) -> (i32, i32, i32) {
    %c0_i32 = arith.constant 0 : i32
    %c0_i32_0 = arith.constant 0 : i32
    return %arg0, %arg1, %c0_i32 : i32, i32, i32
  }
  func.func @transform_1(%arg0: i32, %arg1: i32) -> (i32, i32, i32) {
    %c0_i32 = arith.constant 0 : i32
    %c0_i32_0 = arith.constant 0 : i32
    return %arg0, %arg1, %c0_i32 : i32, i32, i32
  }
  func.func @transform_2(%arg0: i32, %arg1: i32) -> (i32, i32, i32, i32) {
    %c0_i32 = arith.constant 0 : i32
    %c0_i32_0 = arith.constant 0 : i32
    %c0_i32_1 = arith.constant 0 : i32
    %c0_i32_2 = arith.constant 0 : i32
    return %c0_i32, %arg0, %c0_i32_0, %c0_i32_1 : i32, i32, i32, i32
  }
}

</mosaic_0001>

<llo_original>
// kernel: tpu_custom_call.1
$region0: #{tpu_custom_call.1}
  #allocation0 [shape = 'u32[]', space=smem, size = 0x4, offset = 0x4, fixed_abs, tag = 'smem constant byte address 0x4 - core index']
  #allocation1 [shape = 'u32[144,128]{1,0:T(1,128)}', space=vmem, size = 0x12000, scoped, tag = 'internal scratch']
  %s0 = inlined_call_operand.hbm [shape: f32[2,16,128], index: 0, kind: input, shape index: {}]
  %s1 = inlined_call_operand.hbm [shape: bf16[2,16,128], index: 1, kind: input, shape index: {}]
  %s2 = inlined_call_operand.hbm [shape: f32[3,2,8,128], index: 2, kind: output, shape index: {}]
  %s3 = sld [smem:[#allocation0]]
  $region53: #{tpu_custom_call.1} parent=0
    _
  %s5 = ssub.s32 1, %s3
  %s6 = scalar_select 0, %s5, %s3
  $region1: #{tpu_custom_call.1} parent=0
    #allocation2 [shape = 'u8[16384]{0}', space=vmem, size = 0x4000, scoped, tag = 'input window, operand 0']
    #allocation3 [shape = 's32[2]{0}', space=sflag, size = 0x8, scoped, tag = 'scoped memory for tpu_custom_call.1']
    #allocation4 [shape = 's32[2]{0}', space=sflag, size = 0x8, scoped, tag = 'scoped memory for tpu_custom_call.1']
    #allocation5 [shape = 'u8[8192]{0}', space=vmem, size = 0x2000, scoped, tag = 'input window, operand 1']
    #allocation6 [shape = 's32[2]{0}', space=sflag, size = 0x8, scoped, tag = 'scoped memory for tpu_custom_call.1']
    #allocation7 [shape = 'u8[24576]{0}', space=vmem, size = 0x6000, scoped, tag = 'output window, operand 0']
    %7 = vsyncpa [#allocation3], 0
    %s8 = scalar_lea.sflag [#allocation3], 1
    %9 = vsyncpa %s8, 0
    %10 = vsyncpa [#allocation6], 0
    %s11 = scalar_lea.sflag [#allocation6], 1
    %12 = vsyncpa %s11, 0
    %13 = vsyncpa [#allocation4], 0
    %s14 = scalar_lea.sflag [#allocation4], 1
    %15 = vsyncpa %s14, 0
    loop: start=0, step=1, limit=4
    $region2: #{tpu_custom_call.1} parent=1 // loop_pre_header
      _
    $region3: #{tpu_custom_call.1} parent=1 // loop_header
      %s17 = sphi 0, %s21
      %p18 = scmp.ge.s32.totalorder %s17, 4
      %s24 = sphi 0, %s36
      %s25 = sphi 0, %s32
      %s26 = sphi 0, %s24
      %s27 = sphi 0, %s25
      %s28 = sphi 0, %s26
      %s29 = sphi 0, %s27
      %s41 = sphi 0, %s43
      %s44 = sphi 0, %s41
      %s45 = sphi 0, %s44
      %s61 = sphi 0, %s45
      %s69 = sphi 0, %s71
      %s72 = sphi 0, %s69
      %s73 = sphi 0, %s72
      %s89 = sphi 0, %s73
      %s95 = sphi 0, %s97
      %s98 = sphi 0, %s95
      %s99 = sphi 0, %s98
      %s115 = sphi 0, %s99
    $region4: #{tpu_custom_call.1} parent=1 // loop_header_branch
      %20 = sbr.rel (%p18) target = $region8
    $region5: #{tpu_custom_call.1} parent=1 // loop_body
      %s22 = ssub.s32 %s17, 1
      %s23 = ssub.s32 %s17, 2
      %s30 = sadd.s32 1, %s25
      %p31 = scmp.ge.s32.totalorder %s30, 1
      %s32 = scalar_select %p31, 0, %s30
      %s33 = sadd.s32 1, %s24
      %s34 = scalar_select %p31, %s33, %s24
      %p35 = scmp.ge.s32.totalorder %s34, 2
      %s36 = scalar_select %p35, 0, %s34
      %s37 = ssub.s32 %s24, %s36
      %s38 = ssub.s32 %s25, %s32
      %s39 = sor.u32 %s37, %s38
      %p40 = scmp.eq.s32.totalorder %s39, 0
      %s42 = sadd.s32 %s41, 1
      %s43 = scalar_select %p40, %s41, %s42
      %p46 = pneg %p40
      %p47 = scmp.eq.s32.totalorder %s17, 1
      %p48 = por %p46, %p47
      %p49 = scmp.ne.s32.totalorder %s41, %s44
      %p50 = scmp.eq.s32.totalorder %s17, 0
      %p51 = por %p49, %p50
      %p52 = scmp.ne.s32.totalorder %s41, %s44
      %p53 = scmp.eq.s32.totalorder %s22, 1
      %p54 = por %p52, %p53
      %p55 = scmp.ne.s32.totalorder %s44, %s45
      %p56 = scmp.eq.s32.totalorder %s22, 0
      %p57 = por %p55, %p56
      %p58 = scmp.ne.s32.totalorder %s44, %s45
      %p59 = scmp.eq.s32.totalorder %s23, 1
      %p60 = por %p58, %p59
      %p62 = scmp.ne.s32.totalorder %s45, %s61
      %p63 = scmp.eq.s32.totalorder %s23, 0
      %p64 = por %p62, %p63
      %s65 = ssub.s32 %s24, %s36
      %s66 = ssub.s32 %s25, %s32
      %s67 = sor.u32 %s65, %s66
      %p68 = scmp.eq.s32.totalorder %s67, 0
      %s70 = sadd.s32 %s69, 1
      %s71 = scalar_select %p68, %s69, %s70
      %p74 = pneg %p68
      %p75 = scmp.eq.s32.totalorder %s17, 1
      %p76 = por %p74, %p75
      %p77 = scmp.ne.s32.totalorder %s69, %s72
      %p78 = scmp.eq.s32.totalorder %s17, 0
      %p79 = por %p77, %p78
      %p80 = scmp.ne.s32.totalorder %s69, %s72
      %p81 = scmp.eq.s32.totalorder %s22, 1
      %p82 = por %p80, %p81
      %p83 = scmp.ne.s32.totalorder %s72, %s73
      %p84 = scmp.eq.s32.totalorder %s22, 0
      %p85 = por %p83, %p84
      %p86 = scmp.ne.s32.totalorder %s72, %s73
      %p87 = scmp.eq.s32.totalorder %s23, 1
      %p88 = por %p86, %p87
      %p90 = scmp.ne.s32.totalorder %s73, %s89
      %p91 = scmp.eq.s32.totalorder %s23, 0
      %p92 = por %p90, %p91
      %s93 = ssub.s32 %s24, %s36
      %p94 = scmp.eq.s32.totalorder %s93, 0
      %s96 = sadd.s32 %s95, 1
      %s97 = scalar_select %p94, %s95, %s96
      %p100 = pneg %p94
      %p101 = scmp.eq.s32.totalorder %s17, 1
      %p102 = por %p100, %p101
      %p103 = scmp.ne.s32.totalorder %s95, %s98
      %p104 = scmp.eq.s32.totalorder %s17, 0
      %p105 = por %p103, %p104
      %p106 = scmp.ne.s32.totalorder %s95, %s98
      %p107 = scmp.eq.s32.totalorder %s22, 1
      %p108 = por %p106, %p107
      %p109 = scmp.ne.s32.totalorder %s98, %s99
      %p110 = scmp.eq.s32.totalorder %s22, 0
      %p111 = por %p109, %p110
      %p112 = scmp.ne.s32.totalorder %s98, %s99
      %p113 = scmp.eq.s32.totalorder %s23, 1
      %p114 = por %p112, %p113
      %p116 = scmp.ne.s32.totalorder %s99, %s115
      %p117 = scmp.eq.s32.totalorder %s23, 0
      %p118 = por %p116, %p117
      %p119 = scmp.le.s32.totalorder 1, %s17
      %p120 = scmp.lt.s32.totalorder %s17, 3
      %p121 = pnand %p119, %p120
      %p122 = pneg %p121
      // Predicated region
      $region9: #{tpu_custom_call.1} parent=5 // pred_check
        _
      $region10: #{tpu_custom_call.1} parent=5 // pred_check_branch
        %124 = sbr.rel (%p121) target = $region12
      $region11: #{tpu_custom_call.1} parent=5 // pred_region
        %s125 = ssub.s32 %s17, 1
      $region12: #{tpu_custom_call.1} parent=5 // pred_fallthru
        _
      %p126 = scmp.lt.s32.totalorder %s17, 2
      // Predicated region
      $region13: #{tpu_custom_call.1} parent=5 // pred_check
        %p127 = pneg %p126
      $region14: #{tpu_custom_call.1} parent=5 // pred_check_branch
        %129 = sbr.rel (%p127) target = $region16
      $region15: #{tpu_custom_call.1} parent=5 // pred_region
        // Predicated region
        $region17: #{tpu_custom_call.1} parent=15 // pred_check
          %p130 = pneg %p51
        $region18: #{tpu_custom_call.1} parent=15 // pred_check_branch
          %132 = sbr.rel (%p130) target = $region20
        $region19: #{tpu_custom_call.1} parent=15 // pred_region
          %s133 = sand.u32 %s41, 1
          %s134 = scalar_lea.sflag [#allocation3], %s133
          %s135 = sand.u32 %s41, 1
          %s136 = smul.addr %s135, 16
          %s137 = scalar_lea.vmem [#allocation2], %s136
          %s138 = smul.u32 2, %s25
          %s140 = ssub.s32 256, 256
          %141 = vsyncadd %s134, %s140
          %s142 = smul.addr %s24, 2
          %s143 = sadd.s32 %s138, %s142
          %s144 = smul.addr %s143, 128
          %s145 = scalar_lea.hbm %s0, %s144
          %s146 = sshll.u32 %s137, 4
          %s147 = int_to_ptr.vmem [resolvable:$true] %s146
          %152 = dma.hbm_to_vmem [thread:$0]  %s145, 256, %s147, %s134, 128, 128, 8
        $region20: #{tpu_custom_call.1} parent=15 // pred_fallthru
          _
        // Predicated region
        $region21: #{tpu_custom_call.1} parent=15 // pred_check
          %p153 = pneg %p79
        $region22: #{tpu_custom_call.1} parent=15 // pred_check_branch
          %155 = sbr.rel (%p153) target = $region24
        $region23: #{tpu_custom_call.1} parent=15 // pred_region
          %s156 = sand.u32 %s69, 1
          %s157 = scalar_lea.sflag [#allocation6], %s156
          %s158 = sand.u32 %s69, 1
          %s159 = smul.addr %s158, 8
          %s160 = scalar_lea.vmem [#allocation5], %s159
          %s161 = smul.u32 2, %s25
          %s163 = ssub.s32 128, 128
          %164 = vsyncadd %s157, %s163
          %s165 = smul.addr %s24, 2
          %s166 = sadd.s32 %s161, %s165
          %s167 = smul.addr %s166, 64
          %s168 = scalar_lea.hbm %s1, %s167
          %s169 = sshll.u32 %s160, 4
          %s170 = int_to_ptr.vmem [resolvable:$true] %s169
          %175 = dma.hbm_to_vmem [thread:$0]  %s168, 128, %s170, %s157, 64, 64, 4
        $region24: #{tpu_custom_call.1} parent=15 // pred_fallthru
          _
      $region16: #{tpu_custom_call.1} parent=5 // pred_fallthru
        _
      %p176 = scmp.le.s32.totalorder 1, %s17
      %p177 = scmp.lt.s32.totalorder %s17, 3
      %p178 = pnand %p176, %p177
      %p179 = pneg %p178
      // Predicated region
      $region25: #{tpu_custom_call.1} parent=5 // pred_check
        _
      $region26: #{tpu_custom_call.1} parent=5 // pred_check_branch
        %181 = sbr.rel (%p178) target = $region28
      $region27: #{tpu_custom_call.1} parent=5 // pred_region
        %s182 = ssub.s32 %s17, 1
        %s183 = sand.u32 %s44, 1
        %s184 = scalar_lea.sflag [#allocation3], %s183
        %s185 = sand.u32 %s44, 1
        %s186 = smul.addr %s185, 16
        %s187 = scalar_lea.vmem [#allocation2], %s186
        // Predicated region
        $region29: #{tpu_custom_call.1} parent=27 // pred_check
          %p188 = pneg %p57
        $region30: #{tpu_custom_call.1} parent=27 // pred_check_branch
          %190 = sbr.rel (%p188) target = $region32
        $region31: #{tpu_custom_call.1} parent=27 // pred_region
          %191 = dma.done %s184, 256
        $region32: #{tpu_custom_call.1} parent=27 // pred_fallthru
          _
        %s192 = sand.u32 %s72, 1
        %s193 = scalar_lea.sflag [#allocation6], %s192
        %s194 = sand.u32 %s72, 1
        %s195 = smul.addr %s194, 8
        %s196 = scalar_lea.vmem [#allocation5], %s195
        // Predicated region
        $region33: #{tpu_custom_call.1} parent=27 // pred_check
          %p197 = pneg %p85
        $region34: #{tpu_custom_call.1} parent=27 // pred_check_branch
          %199 = sbr.rel (%p197) target = $region36
        $region35: #{tpu_custom_call.1} parent=27 // pred_region
          %200 = dma.done %s193, 128
        $region36: #{tpu_custom_call.1} parent=27 // pred_fallthru
          _
        %s201 = sand.u32 %s44, 1
        %s202 = scalar_lea.sflag [#allocation3], %s201
        %s203 = sand.u32 %s44, 1
        %s204 = smul.addr %s203, 16
        %s205 = scalar_lea.vmem [#allocation2], %s204
        %p206 = pneg %p57
        %p207 = pneg %p54
        %s208 = sand.u32 %s72, 1
        %s209 = scalar_lea.sflag [#allocation6], %s208
        %s210 = sand.u32 %s72, 1
        %s211 = smul.addr %s210, 8
        %s212 = scalar_lea.vmem [#allocation5], %s211
        %p213 = pneg %p85
        %p214 = pneg %p82
        %p215 = pneg %p111
        %p216 = pneg %p108
        %s217 = sand.u32 %s98, 1
        %s218 = scalar_lea.sflag [#allocation4], %s217
        %s219 = sand.u32 %s98, 1
        %s220 = smul.addr %s219, 24
        %s221 = scalar_lea.vmem [#allocation7], %s220
        %s222 = smul.u32 2, %s27
        %s223 = smul.u32 2, %s27
        %p224 = scmp.eq.s32.totalorder %s27, 0
        // Predicated region
        $region37: #{tpu_custom_call.1} parent=27 // pred_check
          %p225 = pneg %p224
        $region38: #{tpu_custom_call.1} parent=27 // pred_check_branch
          %227 = sbr.rel (%p225) target = $region40
        $region39: #{tpu_custom_call.1} parent=27 // pred_region
          %228 = vst [vmem:[%s221] sm:$0xff] 0.0
          %229 = vst [vmem:[%s221 + $0x8] sm:$0xff] 0.0
          %230 = vst [vmem:[%s221 + $0x10] sm:$0xff] 0.0
        $region40: #{tpu_custom_call.1} parent=27 // pred_fallthru
          _
        %v231 = vld [vmem:[%s187] sm:$0xff]
        %v232 = vld [vmem:[%s187 + $0x8] sm:$0xff]
        %v233 = vld [vmem:[%s196] sm:$0xf]
        %v234 = vld [vmem:[%s196 + $0x4] sm:$0xf]
        %v235 = vunpack.c.l.bf16 %v233
        %v236 = vunpack.c.l.bf16 %v234
        %v237 = vand.u32 2147483647, %v231
        %v238 = vand.u32 2147483647, %v232
        %v239 = vsub.f32 0.0, %v237
        %v240 = vsub.f32 0.0, %v238
        %v241 = vmul.f32 %v239, 1.442695
        %v242 = vpow.pop %v241
        %v243 = vmul.f32 %v240, 1.442695
        %v244 = vpow.pop %v243
        %v245 = vadd.f32 %v242, 1.0
        %v246 = vadd.f32 %v244, 1.0
        %v247 = vlog2.pop %v245
        %v248 = vmul.f32 %v247, 0.6931472
        %v249 = vlog2.pop %v246
        %v250 = vmul.f32 %v249, 0.6931472
        %v251 = vmax.f32 %v231, 0.0
        %v252 = vmax.f32 %v232, 0.0
        %v253 = vmul.f32 %v231, %v235
        %v254 = vmul.f32 %v232, %v236
        %v255 = vsub.f32 %v251, %v253
        %v256 = vsub.f32 %v252, %v254
        %v257 = vadd.f32 %v255, %v248
        %v258 = vadd.f32 %v256, %v250
        %v259 = vrcp.pop %v245
        %v260 = vrcp.pop %v246
        %vm261 = vcmp.ge.f32.partialorder %v231, 0.0
        %vm262 = vcmp.ge.f32.partialorder %v232, 0.0
        %v263 = vmul.f32 %v242, %v259
        %v264 = vmul.f32 %v244, %v260
        %v265 = vsel %vm261, %v259, %v263
        %v266 = vsel %vm262, %v260, %v264
        %v267 = vmin.f32 %v231, 0.0
        %v268 = vmin.f32 %v232, 0.0
        %v269 = vsub.f32 %v267, %v248
        %v270 = vsub.f32 %v268, %v250
        %v271 = vmul.f32 %v265, %v265
        %v272 = vmul.f32 %v266, %v266
        %v273 = vmul.f32 %v271, %v265
        %v274 = vmul.f32 %v272, %v266
        %v275 = vsub.f32 1.0, %v273
        %v276 = vsub.f32 1.0, %v274
        %v277 = vmul.f32 %v275, 2.0
        %v278 = vmul.f32 %v276, 2.0
        %v279 = vmul.f32 %v277, %v269
        %v280 = vmul.f32 %v278, %v270
        %v281 = vmul.f32 %v279, 1.442695
        %v282 = vpow.pop %v281
        %v283 = vmul.f32 %v280, 1.442695
        %v284 = vpow.pop %v283
        %v285 = vmul.f32 %v282, 2.0
        %v286 = vmul.f32 %v284, 2.0
        %v287 = vmul.f32 %v285, %v235
        %v288 = vmul.f32 %v286, %v236
        %v289 = vmul.f32 %v282, %v282
        %v290 = vmul.f32 %v284, %v284
        %v291 = vadd.f32 %v289, %v235
        %v292 = vadd.f32 %v290, %v236
        %v293 = vld [vmem:[%s221] sm:$0xff]
        %v294 = vadd.f32 %v287, %v288
        %v295 = vadd.f32 %v293, %v294
        %296 = vst [vmem:[%s221] sm:$0xff] %v295
        %s297 = scalar_lea.vmem %s221, 8 [#allocation7]
        %v298 = vld [vmem:[%s297] sm:$0xff]
        %v299 = vadd.f32 %v291, %v292
        %v300 = vadd.f32 %v298, %v299
        %301 = vst [vmem:[%s297] sm:$0xff] %v300
        %s302 = scalar_lea.vmem %s221, 16 [#allocation7]
        %v303 = vld [vmem:[%s302] sm:$0xff]
        %v304 = vadd.f32 %v257, %v258
        %v305 = vadd.f32 %v303, %v304
        %306 = vst [vmem:[%s302] sm:$0xff] %v305
        %s307 = sand.u32 %s98, 1
        %s308 = scalar_lea.sflag [#allocation4], %s307
        %s309 = sand.u32 %s98, 1
        %s310 = smul.addr %s309, 24
        %s311 = scalar_lea.vmem [#allocation7], %s310
        // Predicated region
        $region41: #{tpu_custom_call.1} parent=27 // pred_check
          %p312 = pneg %p108
        $region42: #{tpu_custom_call.1} parent=27 // pred_check_branch
          %314 = sbr.rel (%p312) target = $region44
        $region43: #{tpu_custom_call.1} parent=27 // pred_region
          %s316 = ssub.s32 384, 384
          %317 = vsyncadd %s308, %s316
          %s318 = smul.addr %s26, 128
          %s319 = scalar_lea.hbm %s2, %s318
          %s320 = sshll.u32 %s311, 4
          %s321 = int_to_ptr.vmem [resolvable:$true] %s320
          %326 = dma.vmem_to_hbm [thread:$0]  %s321, 384, %s319, %s308, 128, 256, 8
        $region44: #{tpu_custom_call.1} parent=27 // pred_fallthru
          _
      $region28: #{tpu_custom_call.1} parent=5 // pred_fallthru
        _
      %p327 = scmp.le.s32.totalorder 2, %s17
      // Predicated region
      $region45: #{tpu_custom_call.1} parent=5 // pred_check
        %p328 = pneg %p327
      $region46: #{tpu_custom_call.1} parent=5 // pred_check_branch
        %330 = sbr.rel (%p328) target = $region48
      $region47: #{tpu_custom_call.1} parent=5 // pred_region
        %s331 = ssub.s32 %s17, 2
        // Predicated region
        $region49: #{tpu_custom_call.1} parent=47 // pred_check
          %p332 = pneg %p114
        $region50: #{tpu_custom_call.1} parent=47 // pred_check_branch
          %334 = sbr.rel (%p332) target = $region52
        $region51: #{tpu_custom_call.1} parent=47 // pred_region
          %s335 = sand.u32 %s99, 1
          %s336 = scalar_lea.sflag [#allocation4], %s335
          %s337 = sand.u32 %s99, 1
          %s338 = smul.addr %s337, 24
          %s339 = scalar_lea.vmem [#allocation7], %s338
          %340 = dma.done %s336, 384
        $region52: #{tpu_custom_call.1} parent=47 // pred_fallthru
          _
      $region48: #{tpu_custom_call.1} parent=5 // pred_fallthru
        _
    $region6: #{tpu_custom_call.1} parent=1 // loop_footer
      %s21 = sadd.s32 1, %s17
    $region7: #{tpu_custom_call.1} parent=1 // loop_footer_branch
      %16 = sbr.rel target = $region3
    $region8: #{tpu_custom_call.1} parent=1 // loop_exit
      _
    %341 = vsyncpa [#allocation3], 1
    %s342 = scalar_lea.sflag [#allocation3], 1
    %343 = vsyncpa %s342, 1
    %344 = vsyncpa [#allocation6], 1
    %s345 = scalar_lea.sflag [#allocation6], 1
    %346 = vsyncpa %s345, 1
    %347 = vsyncpa [#allocation4], 1
    %s348 = scalar_lea.sflag [#allocation4], 1
    %349 = vsyncpa %s348, 1

</llo_original>
